<compile_context>
chip_gen: v6e
topology: v6e:2x2x1
jax: 0.10.0
libtpu: 0.0.40
codegen_flags: <defaults>
</compile_context>

<pallas_src>
import functools

import jax
import jax.numpy as jnp
from jax.experimental import pallas as pl
from jax.experimental.pallas import tpu as pltpu

INPUT_DIM = 50
CONTEXT_DIM = 1
NOISE_DIM = 10
OUT_DIM = 50
IN_DIM = NOISE_DIM + CONTEXT_DIM + INPUT_DIM  # 61

IN_PAD = 64     # 61 -> 64   (clean K for the first matmul)
MID_PAD = 128   # 64 -> 128  (lane-dense activation between layers 4 and 5)
OUT_PAD = 128   # 50 -> 128  (lane-dense output -> unmasked stores)

LAYER_DIMS = [(IN_DIM, 128), (128, 128), (128, 128), (128, 64), (64, OUT_DIM)]
LEAKY_SLOPES = [0.1, 0.2, 0.1, 0.2, None]  # activation after each layer


def _cdiv(a, b):
    return -(-a // b)


def _round_up(n, m):
    return _cdiv(n, m) * m


def _num_tensorcores():
    """Best-effort TensorCore count (v7x has 2 per chip); falls back to 1."""
    try:
        info = pltpu.get_tpu_info()
        for attr in ("num_cores", "num_tensorcores", "tensorcore_count",
                     "core_count"):
            n = getattr(info, attr, None)
            if isinstance(n, int) and n > 0:
                return n
    except Exception:
        pass
    try:
        n = getattr(jax.devices()[0], "num_cores", None)
        if isinstance(n, int) and n > 0:
            return n
    except Exception:
        pass
    return 1


def _choose_tiling(B, batch_tile, num_tc):
    """Padding-minimal, (8,128)-legal batch tiling; even grid on multi-TC."""
    bt_target = max(8, int(batch_tile))
    grid_n = _cdiv(B, bt_target)
    # v7x only: prefer a grid that's a multiple of the TC count so both
    # TensorCores get balanced work — but only if each tile keeps >= 64 rows.
    if num_tc > 1 and grid_n % num_tc != 0:
        cand = _round_up(grid_n, num_tc)
        if _cdiv(B, cand) >= 64:
            grid_n = cand
    bt = _round_up(_cdiv(B, grid_n), 8)
    grid_n = _cdiv(B, bt)
    return bt, bt * grid_n, grid_n


def generator_kernel(x_ref,
                     w1_ref, b1_ref,
                     w2_ref, b2_ref,
                     w3_ref, b3_ref,
                     w4_ref, b4_ref,
                     w5_ref, b5_ref,
                     o_ref,
                     *, compute_dtype):
    """Whole fused MLP per batch tile.  Matmuls accumulate in f32 on the MXU;
    bias-add + LeakyReLU run in f32 on the VPU (free filler under the MXU)."""

    def layer(h, w_ref, b_ref, slope):
        z = jnp.dot(h, w_ref[...], preferred_element_type=jnp.float32)
        z = z + b_ref[...]                       # bias kept f32
        if slope is not None:
            z = jnp.maximum(z, slope * z)        # LeakyReLU, 0 < slope < 1
        return z.astype(compute_dtype)

    h = x_ref[...]                               # (bt, 64), compute_dtype
    h = layer(h, w1_ref, b1_ref, 0.1)            # (bt, 128)
    h = layer(h, w2_ref, b2_ref, 0.2)            # (bt, 128)
    h = layer(h, w3_ref, b3_ref, 0.1)            # (bt, 128)
    h = layer(h, w4_ref, b4_ref, 0.2)            # (bt, 128)  (cols 64.. are 0)
    z = jnp.dot(h, w5_ref[...], preferred_element_type=jnp.float32) + b5_ref[...]
    o_ref[...] = z.astype(o_ref.dtype)           # lane-dense (bt, 128) store


def generator_forward(x, params, *, batch_tile=2048,
                      compute_dtype=jnp.bfloat16):
    """x: [B, 61] f32.  params: list of (W, b), W: [in, out] f32, b: [1, out] f32.

    Any batch size supported (zero-padded internally).  Returns [B, 50] f32.
    """
    B, F = x.shape
    assert F == IN_DIM

    bt, Bp, grid_n = _choose_tiling(B, batch_tile, _num_tensorcores())
    grid = (grid_n,)

    # --- Pad / cast inputs and params (once, in the wrapper) -------------------
    x_p = jnp.pad(x, ((0, Bp - B), (0, IN_PAD - IN_DIM))).astype(compute_dtype)

    (w1, b1), (w2, b2), (w3, b3), (w4, b4), (w5, b5) = params
    w1_p = jnp.pad(w1, ((0, IN_PAD - IN_DIM), (0, 0)))            # (64, 128)
    w4_p = jnp.pad(w4, ((0, 0), (0, MID_PAD - 64)))               # (128, 128)
    b4_p = jnp.pad(b4, ((0, 0), (0, MID_PAD - 64)))               # (1, 128)
    w5_p = jnp.pad(w5, ((0, MID_PAD - 64), (0, OUT_PAD - OUT_DIM)))  # (128, 128)
    b5_p = jnp.pad(b5, ((0, 0), (0, OUT_PAD - OUT_DIM)))          # (1, 128)

    weights = [w1_p, w2, w3, w4_p, w5_p]
    biases = [b1, b2, b3, b4_p, b5_p]

    flat_params = []
    in_specs = [pl.BlockSpec((bt, IN_PAD), lambda i: (i, 0))]
    for w, b in zip(weights, biases):
        w = w.astype(compute_dtype)              # weights in compute dtype
        b = b.astype(jnp.float32)                # biases stay f32
        flat_params.extend([w, b])
        # Full-array blocks + constant index_map -> DMA'd once, VMEM-resident.
        in_specs.append(pl.BlockSpec(w.shape, lambda i: (0, 0)))
        in_specs.append(pl.BlockSpec(b.shape, lambda i: (0, 0)))

    out = pl.pallas_call(
        functools.partial(generator_kernel, compute_dtype=compute_dtype),
        out_shape=jax.ShapeDtypeStruct((Bp, OUT_PAD), jnp.float32),
        grid_spec=pltpu.PrefetchScalarGridSpec(
            num_scalar_prefetch=0,
            grid=grid,
            in_specs=in_specs,
            out_specs=pl.BlockSpec((bt, OUT_PAD), lambda i: (i, 0)),
        ),
        compiler_params=pltpu.CompilerParams(
            dimension_semantics=("parallel",),
            vmem_limit_bytes=32 << 20,
        ),
    )(x_p, *flat_params)

    # TODO(synk): downstream consumers could take the padded (Bp, 128) buffer
    # directly (or bf16 output) to skip this extra HBM slice pass.
    return out[:B, :OUT_DIM]


def init_params(key):
    """Deterministic PyTorch-style (uniform +-1/sqrt(fan_in)) init, stored [in, out]."""
    params = []
    for fan_in, fan_out in LAYER_DIMS:
        key, kw, kb = jax.random.split(key, 3)
        bound = 1.0 / jnp.sqrt(fan_in)
        w = jax.random.uniform(kw, (fan_in, fan_out), jnp.float32, -bound, bound)
        b = jax.random.uniform(kb, (1, fan_out), jnp.float32, -bound, bound)
        params.append((w, b))
    return params


def generator_reference(x, params):
    """Pure-JAX f32 reference of the PyTorch forward."""
    h = x
    for (w, b), slope in zip(params, LEAKY_SLOPES):
        h = h @ w + b
        if slope is not None:
            h = jnp.where(h >= 0, h, slope * h)
    return h


if __name__ == "__main__":
    key = jax.random.PRNGKey(0)
    k_params, k_x1, k_x2 = jax.random.split(key, 3)

    params = init_params(k_params)

    # --- Small f32 validation (exact semantics) --------------------------------
    batch = 8
    x = jax.random.normal(k_x1, (batch, IN_DIM), dtype=jnp.float32)
    out = jax.block_until_ready(
        generator_forward(x, params, compute_dtype=jnp.float32))
    ref = generator_reference(x, params)
    assert out.shape == (batch, OUT_DIM)
    assert jnp.allclose(out, ref, atol=1e-4, rtol=1e-4)

    # --- Default bf16 path, non-multiple batch -> padding + multi-step grid ----
    batch2 = 200
    x2 = jax.random.normal(k_x2, (batch2, IN_DIM), dtype=jnp.float32)
    out2 = jax.block_until_ready(
        generator_forward(x2, params, batch_tile=64))   # default bf16 compute
    ref2 = generator_reference(x2, params)
    assert out2.shape == (batch2, OUT_DIM)
    assert jnp.allclose(out2, ref2, atol=5e-2, rtol=5e-2)

    print("KERNEL_OK")
</pallas_src>

<mosaic_0001>
module attributes {stable_mosaic.version = 11 : i64} {
  func.func @generator_kernel(%arg0: i32, %arg1: memref<8x64xf32, #tpu.memory_space<vmem>>, %arg2: memref<64x128xf32, #tpu.memory_space<vmem>>, %arg3: memref<1x128xf32, #tpu.memory_space<vmem>>, %arg4: memref<128x128xf32, #tpu.memory_space<vmem>>, %arg5: memref<1x128xf32, #tpu.memory_space<vmem>>, %arg6: memref<128x128xf32, #tpu.memory_space<vmem>>, %arg7: memref<1x128xf32, #tpu.memory_space<vmem>>, %arg8: memref<128x128xf32, #tpu.memory_space<vmem>>, %arg9: memref<1x128xf32, #tpu.memory_space<vmem>>, %arg10: memref<128x128xf32, #tpu.memory_space<vmem>>, %arg11: memref<1x128xf32, #tpu.memory_space<vmem>>, %arg12: memref<8x128xf32, #tpu.memory_space<vmem>>) attributes {dimension_semantics = [#tpu.dimension_semantics<parallel>], iteration_bounds = array<i64: 1>, scalar_prefetch = 0 : i64, scratch_operands = 0 : i64, tpu.core_type = #tpu.core_type<tc>, window_params = [{transform_indices = @transform_0, window_bounds = array<i64: 8, 64>}, {pipeline_mode = #tpu.pipeline_mode<synchronous>, transform_indices = @transform_1, window_bounds = array<i64: 64, 128>}, {pipeline_mode = #tpu.pipeline_mode<synchronous>, transform_indices = @transform_2, window_bounds = array<i64: 1, 128>}, {pipeline_mode = #tpu.pipeline_mode<synchronous>, transform_indices = @transform_3, window_bounds = array<i64: 128, 128>}, {pipeline_mode = #tpu.pipeline_mode<synchronous>, transform_indices = @transform_4, window_bounds = array<i64: 1, 128>}, {pipeline_mode = #tpu.pipeline_mode<synchronous>, transform_indices = @transform_5, window_bounds = array<i64: 128, 128>}, {pipeline_mode = #tpu.pipeline_mode<synchronous>, transform_indices = @transform_6, window_bounds = array<i64: 1, 128>}, {pipeline_mode = #tpu.pipeline_mode<synchronous>, transform_indices = @transform_7, window_bounds = array<i64: 128, 128>}, {pipeline_mode = #tpu.pipeline_mode<synchronous>, transform_indices = @transform_8, window_bounds = array<i64: 1, 128>}, {pipeline_mode = #tpu.pipeline_mode<synchronous>, transform_indices = @transform_9, window_bounds = array<i64: 128, 128>}, {pipeline_mode = #tpu.pipeline_mode<synchronous>, transform_indices = @transform_10, window_bounds = array<i64: 1, 128>}, {transform_indices = @transform_11, window_bounds = array<i64: 8, 128>}]} {
    %c0 = arith.constant 0 : index
    %c0_0 = arith.constant 0 : index
    %0 = vector.load %arg1[%c0, %c0_0] : memref<8x64xf32, #tpu.memory_space<vmem>>, vector<8x64xf32>
    %c0_1 = arith.constant 0 : index
    %c0_2 = arith.constant 0 : index
    %1 = vector.load %arg2[%c0_1, %c0_2] : memref<64x128xf32, #tpu.memory_space<vmem>>, vector<64x128xf32>
    %cst = arith.constant dense<0.000000e+00> : vector<8x128xf32>
    %2 = tpu.matmul %0, %1, %cst {dimension_numbers = #tpu.dot_dimension_numbers<[1], [0], [0], [1], [0, 0, 1, 1], [], []>} : vector<8x64xf32>, vector<64x128xf32>, vector<8x128xf32> -> vector<8x128xf32>
    %c0_3 = arith.constant 0 : index
    %c0_4 = arith.constant 0 : index
    %3 = vector.load %arg3[%c0_3, %c0_4] : memref<1x128xf32, #tpu.memory_space<vmem>>, vector<1x128xf32>
    %4 = vector.broadcast %3 : vector<1x128xf32> to vector<8x128xf32>
    %5 = arith.addf %2, %4 : vector<8x128xf32>
    %cst_5 = arith.constant 1.000000e-01 : f32
    %6 = vector.broadcast %cst_5 : f32 to vector<8x128xf32>
    %7 = arith.mulf %6, %5 : vector<8x128xf32>
    %8 = arith.maximumf %5, %7 : vector<8x128xf32>
    %c0_6 = arith.constant 0 : index
    %c0_7 = arith.constant 0 : index
    %9 = vector.load %arg4[%c0_6, %c0_7] : memref<128x128xf32, #tpu.memory_space<vmem>>, vector<128x128xf32>
    %cst_8 = arith.constant dense<0.000000e+00> : vector<8x128xf32>
    %10 = tpu.matmul %8, %9, %cst_8 {dimension_numbers = #tpu.dot_dimension_numbers<[1], [0], [0], [1], [0, 0, 1, 1], [], []>} : vector<8x128xf32>, vector<128x128xf32>, vector<8x128xf32> -> vector<8x128xf32>
    %c0_9 = arith.constant 0 : index
    %c0_10 = arith.constant 0 : index
    %11 = vector.load %arg5[%c0_9, %c0_10] : memref<1x128xf32, #tpu.memory_space<vmem>>, vector<1x128xf32>
    %12 = vector.broadcast %11 : vector<1x128xf32> to vector<8x128xf32>
    %13 = arith.addf %10, %12 : vector<8x128xf32>
    %cst_11 = arith.constant 2.000000e-01 : f32
    %14 = vector.broadcast %cst_11 : f32 to vector<8x128xf32>
    %15 = arith.mulf %14, %13 : vector<8x128xf32>
    %16 = arith.maximumf %13, %15 : vector<8x128xf32>
    %c0_12 = arith.constant 0 : index
    %c0_13 = arith.constant 0 : index
    %17 = vector.load %arg6[%c0_12, %c0_13] : memref<128x128xf32, #tpu.memory_space<vmem>>, vector<128x128xf32>
    %cst_14 = arith.constant dense<0.000000e+00> : vector<8x128xf32>
    %18 = tpu.matmul %16, %17, %cst_14 {dimension_numbers = #tpu.dot_dimension_numbers<[1], [0], [0], [1], [0, 0, 1, 1], [], []>} : vector<8x128xf32>, vector<128x128xf32>, vector<8x128xf32> -> vector<8x128xf32>
    %c0_15 = arith.constant 0 : index
    %c0_16 = arith.constant 0 : index
    %19 = vector.load %arg7[%c0_15, %c0_16] : memref<1x128xf32, #tpu.memory_space<vmem>>, vector<1x128xf32>
    %20 = vector.broadcast %19 : vector<1x128xf32> to vector<8x128xf32>
    %21 = arith.addf %18, %20 : vector<8x128xf32>
    %cst_17 = arith.constant 1.000000e-01 : f32
    %22 = vector.broadcast %cst_17 : f32 to vector<8x128xf32>
    %23 = arith.mulf %22, %21 : vector<8x128xf32>
    %24 = arith.maximumf %21, %23 : vector<8x128xf32>
    %c0_18 = arith.constant 0 : index
    %c0_19 = arith.constant 0 : index
    %25 = vector.load %arg8[%c0_18, %c0_19] : memref<128x128xf32, #tpu.memory_space<vmem>>, vector<128x128xf32>
    %cst_20 = arith.constant dense<0.000000e+00> : vector<8x128xf32>
    %26 = tpu.matmul %24, %25, %cst_20 {dimension_numbers = #tpu.dot_dimension_numbers<[1], [0], [0], [1], [0, 0, 1, 1], [], []>} : vector<8x128xf32>, vector<128x128xf32>, vector<8x128xf32> -> vector<8x128xf32>
    %c0_21 = arith.constant 0 : index
    %c0_22 = arith.constant 0 : index
    %27 = vector.load %arg9[%c0_21, %c0_22] : memref<1x128xf32, #tpu.memory_space<vmem>>, vector<1x128xf32>
    %28 = vector.broadcast %27 : vector<1x128xf32> to vector<8x128xf32>
    %29 = arith.addf %26, %28 : vector<8x128xf32>
    %cst_23 = arith.constant 2.000000e-01 : f32
    %30 = vector.broadcast %cst_23 : f32 to vector<8x128xf32>
    %31 = arith.mulf %30, %29 : vector<8x128xf32>
    %32 = arith.maximumf %29, %31 : vector<8x128xf32>
    %c0_24 = arith.constant 0 : index
    %c0_25 = arith.constant 0 : index
    %33 = vector.load %arg10[%c0_24, %c0_25] : memref<128x128xf32, #tpu.memory_space<vmem>>, vector<128x128xf32>
    %cst_26 = arith.constant dense<0.000000e+00> : vector<8x128xf32>
    %34 = tpu.matmul %32, %33, %cst_26 {dimension_numbers = #tpu.dot_dimension_numbers<[1], [0], [0], [1], [0, 0, 1, 1], [], []>} : vector<8x128xf32>, vector<128x128xf32>, vector<8x128xf32> -> vector<8x128xf32>
    %c0_27 = arith.constant 0 : index
    %c0_28 = arith.constant 0 : index
    %35 = vector.load %arg11[%c0_27, %c0_28] : memref<1x128xf32, #tpu.memory_space<vmem>>, vector<1x128xf32>
    %36 = vector.broadcast %35 : vector<1x128xf32> to vector<8x128xf32>
    %37 = arith.addf %34, %36 : vector<8x128xf32>
    %c0_29 = arith.constant 0 : index
    %c0_30 = arith.constant 0 : index
    %38 = vector.load %arg12[%c0_29, %c0_30] : memref<8x128xf32, #tpu.memory_space<vmem>>, vector<8x128xf32>
    tpu.vector_store %arg12[%c0_29, %c0_30], %37 {strides = array<i32>} : memref<8x128xf32, #tpu.memory_space<vmem>>, vector<8x128xf32>,
    return
  }
  func.func @transform_0(%arg0: i32) -> (i32, i32) {
    %c0_i32 = arith.constant 0 : i32
    %c0_i32_0 = arith.constant 0 : i32
    return %arg0, %c0_i32 : i32, i32
  }
  func.func @transform_1(%arg0: i32) -> (i32, i32) {
    %c0_i32 = arith.constant 0 : i32
    %c0_i32_0 = arith.constant 0 : i32
    %c0_i32_1 = arith.constant 0 : i32
    return %c0_i32, %c0_i32_0 : i32, i32
  }
  func.func @transform_2(%arg0: i32) -> (i32, i32) {
    %c0_i32 = arith.constant 0 : i32
    %c0_i32_0 = arith.constant 0 : i32
    %c0_i32_1 = arith.constant 0 : i32
    return %c0_i32, %c0_i32_0 : i32, i32
  }
  func.func @transform_3(%arg0: i32) -> (i32, i32) {
    %c0_i32 = arith.constant 0 : i32
    %c0_i32_0 = arith.constant 0 : i32
    %c0_i32_1 = arith.constant 0 : i32
    return %c0_i32, %c0_i32_0 : i32, i32
  }
  func.func @transform_4(%arg0: i32) -> (i32, i32) {
    %c0_i32 = arith.constant 0 : i32
    %c0_i32_0 = arith.constant 0 : i32
    %c0_i32_1 = arith.constant 0 : i32
    return %c0_i32, %c0_i32_0 : i32, i32
  }
  func.func @transform_5(%arg0: i32) -> (i32, i32) {
    %c0_i32 = arith.constant 0 : i32
    %c0_i32_0 = arith.constant 0 : i32
    %c0_i32_1 = arith.constant 0 : i32
    return %c0_i32, %c0_i32_0 : i32, i32
  }
  func.func @transform_6(%arg0: i32) -> (i32, i32) {
    %c0_i32 = arith.constant 0 : i32
    %c0_i32_0 = arith.constant 0 : i32
    %c0_i32_1 = arith.constant 0 : i32
    return %c0_i32, %c0_i32_0 : i32, i32
  }
  func.func @transform_7(%arg0: i32) -> (i32, i32) {
    %c0_i32 = arith.constant 0 : i32
    %c0_i32_0 = arith.constant 0 : i32
    %c0_i32_1 = arith.constant 0 : i32
    return %c0_i32, %c0_i32_0 : i32, i32
  }
  func.func @transform_8(%arg0: i32) -> (i32, i32) {
    %c0_i32 = arith.constant 0 : i32
    %c0_i32_0 = arith.constant 0 : i32
    %c0_i32_1 = arith.constant 0 : i32
    return %c0_i32, %c0_i32_0 : i32, i32
  }
  func.func @transform_9(%arg0: i32) -> (i32, i32) {
    %c0_i32 = arith.constant 0 : i32
    %c0_i32_0 = arith.constant 0 : i32
    %c0_i32_1 = arith.constant 0 : i32
    return %c0_i32, %c0_i32_0 : i32, i32
  }
  func.func @transform_10(%arg0: i32) -> (i32, i32) {
    %c0_i32 = arith.constant 0 : i32
    %c0_i32_0 = arith.constant 0 : i32
    %c0_i32_1 = arith.constant 0 : i32
    return %c0_i32, %c0_i32_0 : i32, i32
  }
  func.func @transform_11(%arg0: i32) -> (i32, i32) {
    %c0_i32 = arith.constant 0 : i32
    %c0_i32_0 = arith.constant 0 : i32
    return %arg0, %c0_i32 : i32, i32
  }
}

</mosaic_0001>

<llo_original>
// kernel: tpu_custom_call.1
$region0: #{tpu_custom_call.1}
  #allocation0 [shape = 'u32[]', space=smem, size = 0x4, offset = 0x4, fixed_abs, tag = 'smem constant byte address 0x4 - core index']
  #allocation1 [shape = 'u32[144,128]{1,0:T(1,128)}', space=vmem, size = 0x12000, scoped, tag = 'internal scratch']
  %s0 = inlined_call_operand.hbm [shape: f32[8,64], index: 0, kind: input, shape index: {}]
  %s1 = inlined_call_operand.hbm [shape: f32[64,128], index: 1, kind: input, shape index: {}]
  %s2 = inlined_call_operand.vmem [shape: f32[1,128], index: 2, kind: input, shape index: {}]
  %s3 = inlined_call_operand.hbm [shape: f32[128,128], index: 3, kind: input, shape index: {}]
  %s4 = inlined_call_operand.vmem [shape: f32[1,128], index: 4, kind: input, shape index: {}]
  %s5 = inlined_call_operand.hbm [shape: f32[128,128], index: 5, kind: input, shape index: {}]
  %s6 = inlined_call_operand.vmem [shape: f32[1,128], index: 6, kind: input, shape index: {}]
  %s7 = inlined_call_operand.hbm [shape: f32[128,128], index: 7, kind: input, shape index: {}]
  %s8 = inlined_call_operand.vmem [shape: f32[1,128], index: 8, kind: input, shape index: {}]
  %s9 = inlined_call_operand.hbm [shape: f32[128,128], index: 9, kind: input, shape index: {}]
  %s10 = inlined_call_operand.vmem [shape: f32[1,128], index: 10, kind: input, shape index: {}]
  %s11 = inlined_call_operand.hbm [shape: f32[8,128], index: 11, kind: output, shape index: {}]
  %s12 = sld [smem:[#allocation0]]
  $region78: #{tpu_custom_call.1} parent=0
    _
  %s14 = ssub.s32 1, %s12
  %s15 = scalar_select 0, %s14, %s12
  $region1: #{tpu_custom_call.1} parent=0
    #allocation2 [shape = 'u8[4096]{0}', space=vmem, size = 0x1000, scoped, tag = 'input window, operand 0, single buffered']
    #allocation3 [shape = 's32[1]{0}', space=sflag, size = 0x4, scoped, tag = 'scoped memory for tpu_custom_call.1']
    #allocation4 [shape = 's32[1]{0}', space=sflag, size = 0x4, scoped, tag = 'scoped memory for tpu_custom_call.1']
    #allocation5 [shape = 'u8[32768]{0}', space=vmem, size = 0x8000, scoped, tag = 'input window, operand 1, single buffered']
    #allocation6 [shape = 's32[1]{0}', space=sflag, size = 0x4, scoped, tag = 'scoped memory for tpu_custom_call.1']
    #allocation7 [shape = 'u8[65536]{0}', space=vmem, size = 0x10000, scoped, tag = 'input window, operand 3, single buffered']
    #allocation8 [shape = 'u8[65536]{0}', space=vmem, size = 0x10000, scoped, tag = 'input window, operand 5, single buffered']
    #allocation9 [shape = 's32[1]{0}', space=sflag, size = 0x4, scoped, tag = 'scoped memory for tpu_custom_call.1']
    #allocation10 [shape = 'u8[65536]{0}', space=vmem, size = 0x10000, scoped, tag = 'input window, operand 7, single buffered']
    #allocation11 [shape = 'u8[65536]{0}', space=vmem, size = 0x10000, scoped, tag = 'input window, operand 9, single buffered']
    #allocation12 [shape = 's32[1]{0}', space=sflag, size = 0x4, scoped, tag = 'scoped memory for tpu_custom_call.1']
    #allocation13 [shape = 'u8[4096]{0}', space=vmem, size = 0x1000, scoped, tag = 'output window, operand 0, single buffered']
    %16 = vsyncpa [#allocation3], 0
    %17 = vsyncpa [#allocation6], 0
    %18 = vsyncpa [#allocation9], 0
    %19 = vsyncpa [#allocation12], 0
    %20 = vsyncpa [#allocation4], 0
    // Predicated region
    $region2: #{tpu_custom_call.1} parent=1 // pred_check
      _
    $region3: #{tpu_custom_call.1} parent=1 // pred_check_branch
      %22 = sbr.rel (0) target = $region5
    $region4: #{tpu_custom_call.1} parent=1 // pred_region
      %s24 = ssub.s32 128, 128
      %25 = vsyncadd [#allocation3], %s24
      %s27 = sshll.u32 [#allocation2], 4
      %s28 = int_to_ptr.vmem [resolvable:$true] %s27
      %30 = dma.hbm_to_vmem [thread:$0]  %s0, 128, %s28, [#allocation3]
    $region5: #{tpu_custom_call.1} parent=1 // pred_fallthru
      _
    // Predicated region
    $region6: #{tpu_custom_call.1} parent=1 // pred_check
      _
    $region7: #{tpu_custom_call.1} parent=1 // pred_check_branch
      %32 = sbr.rel (0) target = $region9
    $region8: #{tpu_custom_call.1} parent=1 // pred_region
      %s34 = ssub.s32 1024, 1024
      %35 = vsyncadd [#allocation6], %s34
      %s36 = sshll.u32 [#allocation5], 4
      %s37 = int_to_ptr.vmem [resolvable:$true] %s36
      %42 = dma.hbm_to_vmem [thread:$0]  %s1, 1024, %s37, [#allocation6], 128, 128, 8
    $region9: #{tpu_custom_call.1} parent=1 // pred_fallthru
      _
    // Predicated region
    $region10: #{tpu_custom_call.1} parent=1 // pred_check
      _
    $region11: #{tpu_custom_call.1} parent=1 // pred_check_branch
      %44 = sbr.rel (0) target = $region13
    $region12: #{tpu_custom_call.1} parent=1 // pred_region
      _
    $region13: #{tpu_custom_call.1} parent=1 // pred_fallthru
      _
    // Predicated region
    $region14: #{tpu_custom_call.1} parent=1 // pred_check
      _
    $region15: #{tpu_custom_call.1} parent=1 // pred_check_branch
      %46 = sbr.rel (0) target = $region17
    $region16: #{tpu_custom_call.1} parent=1 // pred_region
      %s48 = ssub.s32 2048, 2048
      %49 = vsyncadd [#allocation6], %s48
      %s50 = sshll.u32 [#allocation7], 4
      %s51 = int_to_ptr.vmem [resolvable:$true] %s50
      %56 = dma.hbm_to_vmem [thread:$0]  %s3, 2048, %s51, [#allocation6], 128, 128, 8
    $region17: #{tpu_custom_call.1} parent=1 // pred_fallthru
      _
    // Predicated region
    $region18: #{tpu_custom_call.1} parent=1 // pred_check
      _
    $region19: #{tpu_custom_call.1} parent=1 // pred_check_branch
      %58 = sbr.rel (0) target = $region21
    $region20: #{tpu_custom_call.1} parent=1 // pred_region
      _
    $region21: #{tpu_custom_call.1} parent=1 // pred_fallthru
      _
    // Predicated region
    $region22: #{tpu_custom_call.1} parent=1 // pred_check
      _
    $region23: #{tpu_custom_call.1} parent=1 // pred_check_branch
      %60 = sbr.rel (0) target = $region25
    $region24: #{tpu_custom_call.1} parent=1 // pred_region
      %s62 = ssub.s32 2048, 2048
      %63 = vsyncadd [#allocation9], %s62
      %s64 = sshll.u32 [#allocation8], 4
      %s65 = int_to_ptr.vmem [resolvable:$true] %s64
      %70 = dma.hbm_to_vmem [thread:$0]  %s5, 2048, %s65, [#allocation9], 128, 128, 8
    $region25: #{tpu_custom_call.1} parent=1 // pred_fallthru
      _
    // Predicated region
    $region26: #{tpu_custom_call.1} parent=1 // pred_check
      _
    $region27: #{tpu_custom_call.1} parent=1 // pred_check_branch
      %72 = sbr.rel (0) target = $region29
    $region28: #{tpu_custom_call.1} parent=1 // pred_region
      _
    $region29: #{tpu_custom_call.1} parent=1 // pred_fallthru
      _
    // Predicated region
    $region30: #{tpu_custom_call.1} parent=1 // pred_check
      _
    $region31: #{tpu_custom_call.1} parent=1 // pred_check_branch
      %74 = sbr.rel (0) target = $region33
    $region32: #{tpu_custom_call.1} parent=1 // pred_region
      %s76 = ssub.s32 2048, 2048
      %77 = vsyncadd [#allocation9], %s76
      %s78 = sshll.u32 [#allocation10], 4
      %s79 = int_to_ptr.vmem [resolvable:$true] %s78
      %84 = dma.hbm_to_vmem [thread:$0]  %s7, 2048, %s79, [#allocation9], 128, 128, 8
    $region33: #{tpu_custom_call.1} parent=1 // pred_fallthru
      _
    // Predicated region
    $region34: #{tpu_custom_call.1} parent=1 // pred_check
      _
    $region35: #{tpu_custom_call.1} parent=1 // pred_check_branch
      %86 = sbr.rel (0) target = $region37
    $region36: #{tpu_custom_call.1} parent=1 // pred_region
      _
    $region37: #{tpu_custom_call.1} parent=1 // pred_fallthru
      _
    // Predicated region
    $region38: #{tpu_custom_call.1} parent=1 // pred_check
      _
    $region39: #{tpu_custom_call.1} parent=1 // pred_check_branch
      %88 = sbr.rel (0) target = $region41
    $region40: #{tpu_custom_call.1} parent=1 // pred_region
      %s90 = ssub.s32 2048, 2048
      %91 = vsyncadd [#allocation12], %s90
      %s92 = sshll.u32 [#allocation11], 4
      %s93 = int_to_ptr.vmem [resolvable:$true] %s92
      %98 = dma.hbm_to_vmem [thread:$0]  %s9, 2048, %s93, [#allocation12], 128, 128, 8
    $region41: #{tpu_custom_call.1} parent=1 // pred_fallthru
      _
    // Predicated region
    $region42: #{tpu_custom_call.1} parent=1 // pred_check
      _
    $region43: #{tpu_custom_call.1} parent=1 // pred_check_branch
      %100 = sbr.rel (0) target = $region45
    $region44: #{tpu_custom_call.1} parent=1 // pred_region
      _
    $region45: #{tpu_custom_call.1} parent=1 // pred_fallthru
      _
    // Predicated region
    $region46: #{tpu_custom_call.1} parent=1 // pred_check
      _
    $region47: #{tpu_custom_call.1} parent=1 // pred_check_branch
      %102 = sbr.rel (0) target = $region49
    $region48: #{tpu_custom_call.1} parent=1 // pred_region
      %103 = dma.done [#allocation3], 128
    $region49: #{tpu_custom_call.1} parent=1 // pred_fallthru
      _
    // Predicated region
    $region50: #{tpu_custom_call.1} parent=1 // pred_check
      _
    $region51: #{tpu_custom_call.1} parent=1 // pred_check_branch
      %105 = sbr.rel (0) target = $region53
    $region52: #{tpu_custom_call.1} parent=1 // pred_region
      %106 = dma.done [#allocation6], 1024
    $region53: #{tpu_custom_call.1} parent=1 // pred_fallthru
      _
    // Predicated region
    $region54: #{tpu_custom_call.1} parent=1 // pred_check
      _
    $region55: #{tpu_custom_call.1} parent=1 // pred_check_branch
      %108 = sbr.rel (0) target = $region57
    $region56: #{tpu_custom_call.1} parent=1 // pred_region
      %109 = dma.done [#allocation6], 2048
    $region57: #{tpu_custom_call.1} parent=1 // pred_fallthru
      _
    // Predicated region
    $region58: #{tpu_custom_call.1} parent=1 // pred_check
      _
    $region59: #{tpu_custom_call.1} parent=1 // pred_check_branch
      %111 = sbr.rel (0) target = $region61
    $region60: #{tpu_custom_call.1} parent=1 // pred_region
      %112 = dma.done [#allocation9], 2048
    $region61: #{tpu_custom_call.1} parent=1 // pred_fallthru
      _
    // Predicated region
    $region62: #{tpu_custom_call.1} parent=1 // pred_check
      _
    $region63: #{tpu_custom_call.1} parent=1 // pred_check_branch
      %114 = sbr.rel (0) target = $region65
    $region64: #{tpu_custom_call.1} parent=1 // pred_region
      %115 = dma.done [#allocation9], 2048
    $region65: #{tpu_custom_call.1} parent=1 // pred_fallthru
      _
    // Predicated region
    $region66: #{tpu_custom_call.1} parent=1 // pred_check
      _
    $region67: #{tpu_custom_call.1} parent=1 // pred_check_branch
      %117 = sbr.rel (0) target = $region69
    $region68: #{tpu_custom_call.1} parent=1 // pred_region
      %118 = dma.done [#allocation12], 2048
    $region69: #{tpu_custom_call.1} parent=1 // pred_fallthru
      _
    %v119 = vld [vmem:[#allocation2] sm:$0xff]
    %v120 = vld [vmem:[#allocation5] sm:$0xff]
    %v121 = vld [vmem:[#allocation5 + $0x8] sm:$0xff]
    %v122 = vld [vmem:[#allocation5 + $0x10] sm:$0xff]
    %v123 = vld [vmem:[#allocation5 + $0x18] sm:$0xff]
    %v124 = vld [vmem:[#allocation5 + $0x20] sm:$0xff]
    %v125 = vld [vmem:[#allocation5 + $0x28] sm:$0xff]
    %v126 = vld [vmem:[#allocation5 + $0x30] sm:$0xff]
    %v127 = vld [vmem:[#allocation5 + $0x38] sm:$0xff]
    %v128 = vld [vmem:[%s2] sm:$0x1]
    %v130 = vlaneseq
    %v131 = vshrl.u32 %v130, 7
    %v132 = vsub.s32 0, %v131
    %v133 = vrot.slane %v128, %v132
    %vm135 = vcmask 523264
    %v137 = vsel %vm135, %v119, 0
    %139 = vmatprep.subr.mxu0 0.0
    %140 = vmatpush1.msra.mxu0 0.0
    %141 = vmatprep.subr.mxu0 0.0
    %142 = vmatpush1.msra.mxu0 0.0
    %143 = vmatprep.subr.mxu0 0.0
    %144 = vmatpush1.msra.mxu0 0.0
    %145 = vmatprep.subr.mxu0 0.0
    %146 = vmatpush1.msra.mxu0 0.0
    %147 = vmatprep.subr.mxu0 0.0
    %148 = vmatpush1.msra.mxu0 0.0
    %149 = vmatprep.subr.mxu0 0.0
    %150 = vmatpush1.msra.mxu0 0.0
    %151 = vmatprep.subr.mxu0 0.0
    %152 = vmatpush1.msra.mxu0 0.0
    %153 = vmatprep.subr.mxu0 0.0
    %154 = vmatpush1.msra.mxu0 0.0
    %155 = vmatprep.subr.mxu0 0.0
    %156 = vmatpush1.msra.mxu0 %v127
    %157 = vmatprep.subr.mxu0 0.0
    %158 = vmatpush1.msra.mxu0 %v126
    %159 = vmatprep.subr.mxu0 0.0
    %160 = vmatpush1.msra.mxu0 %v125
    %161 = vmatprep.subr.mxu0 0.0
    %162 = vmatpush1.msra.mxu0 %v124
    %163 = vmatprep.subr.mxu0 0.0
    %164 = vmatpush1.msra.mxu0 %v123
    %165 = vmatprep.subr.mxu0 0.0
    %166 = vmatpush1.msra.mxu0 %v122
    %167 = vmatprep.subr.mxu0 0.0
    %168 = vmatpush1.msra.mxu0 %v121
    %169 = vmatprep.subr.mxu0 0.0
    %170 = vmatpush1.msra.mxu0 %v120
    %171 = vmatprep.subr.mxu0 0.0
    %172 = vmatpush2.msra.mxu0 0.0
    %173 = vmatprep.subr.mxu0 0.0
    %174 = vmatpush2.msra.mxu0 0.0
    %175 = vmatprep.subr.mxu0 0.0
    %176 = vmatpush2.msra.mxu0 0.0
    %177 = vmatprep.subr.mxu0 0.0
    %178 = vmatpush2.msra.mxu0 0.0
    %179 = vmatprep.subr.mxu0 0.0
    %180 = vmatpush2.msra.mxu0 0.0
    %181 = vmatprep.subr.mxu0 0.0
    %182 = vmatpush2.msra.mxu0 0.0
    %183 = vmatprep.subr.mxu0 0.0
    %184 = vmatpush2.msra.mxu0 0.0
    %185 = vmatprep.subr.mxu0 0.0
    %186 = vmatpush2.msra.mxu0 0.0
    %187 = vmatprep.subr.mxu0 0.0
    %188 = vmatpush2.msra.mxu0 0.0
    %189 = vmatprep.subr.mxu0 0.0
    %190 = vmatpush2.msra.mxu0 0.0
    %191 = vmatprep.subr.mxu0 0.0
    %192 = vmatpush2.msra.mxu0 0.0
    %193 = vmatprep.subr.mxu0 0.0
    %194 = vmatpush2.msra.mxu0 0.0
    %195 = vmatprep.subr.mxu0 0.0
    %196 = vmatpush2.msra.mxu0 0.0
    %197 = vmatprep.subr.mxu0 0.0
    %198 = vmatpush2.msra.mxu0 0.0
    %199 = vmatprep.subr.mxu0 0.0
    %200 = vmatpush2.msra.mxu0 0.0
    %201 = vmatprep.subr.mxu0 0.0
    %202 = vmatpush2.msra.mxu0 0.0
    %203 = vmatprep.mubr.f32.mxu0 0.0
    %204 = vmatmul.mubr.f32.gmra.mxu0 %v137
    %v205 = vpop.f32.mrf.mxu0
    %v206 = vadd.f32 %v133, %v205
    %v207 = vpop.f32.mrf.mxu0
    %208 = vdwg.mxu0
    %v209 = vmul.f32 %v206, 0.1
    %v210 = vmax.f32 %v206, %v209
    %v211 = vld [vmem:[#allocation7] sm:$0xff]
    %v212 = vld [vmem:[#allocation7 + $0x8] sm:$0xff]
    %v213 = vld [vmem:[#allocation7 + $0x10] sm:$0xff]
    %v214 = vld [vmem:[#allocation7 + $0x18] sm:$0xff]
    %v215 = vld [vmem:[#allocation7 + $0x20] sm:$0xff]
    %v216 = vld [vmem:[#allocation7 + $0x28] sm:$0xff]
    %v217 = vld [vmem:[#allocation7 + $0x30] sm:$0xff]
    %v218 = vld [vmem:[#allocation7 + $0x38] sm:$0xff]
    %v219 = vld [vmem:[#allocation7 + $0x40] sm:$0xff]
    %v220 = vld [vmem:[#allocation7 + $0x48] sm:$0xff]
    %v221 = vld [vmem:[#allocation7 + $0x50] sm:$0xff]
    %v222 = vld [vmem:[#allocation7 + $0x58] sm:$0xff]
    %v223 = vld [vmem:[#allocation7 + $0x60] sm:$0xff]
    %v224 = vld [vmem:[#allocation7 + $0x68] sm:$0xff]
    %v225 = vld [vmem:[#allocation7 + $0x70] sm:$0xff]
    %v226 = vld [vmem:[#allocation7 + $0x78] sm:$0xff]
    %v227 = vld [vmem:[%s4] sm:$0x1]
    %v229 = vlaneseq
    %v230 = vshrl.u32 %v229, 7
    %v231 = vsub.s32 0, %v230
    %v232 = vrot.slane %v227, %v231
    %234 = vmatprep.subr.mxu0 0.0
    %235 = vmatpush1.msra.mxu0 %v226
    %236 = vmatprep.subr.mxu0 0.0
    %237 = vmatpush1.msra.mxu0 %v225
    %238 = vmatprep.subr.mxu0 0.0
    %239 = vmatpush1.msra.mxu0 %v224
    %240 = vmatprep.subr.mxu0 0.0
    %241 = vmatpush1.msra.mxu0 %v223
    %242 = vmatprep.subr.mxu0 0.0
    %243 = vmatpush1.msra.mxu0 %v222
    %244 = vmatprep.subr.mxu0 0.0
    %245 = vmatpush1.msra.mxu0 %v221
    %246 = vmatprep.subr.mxu0 0.0
    %247 = vmatpush1.msra.mxu0 %v220
    %248 = vmatprep.subr.mxu0 0.0
    %249 = vmatpush1.msra.mxu0 %v219
    %250 = vmatprep.subr.mxu0 0.0
    %251 = vmatpush1.msra.mxu0 %v218
    %252 = vmatprep.subr.mxu0 0.0
    %253 = vmatpush1.msra.mxu0 %v217
    %254 = vmatprep.subr.mxu0 0.0
    %255 = vmatpush1.msra.mxu0 %v216
    %256 = vmatprep.subr.mxu0 0.0
    %257 = vmatpush1.msra.mxu0 %v215
    %258 = vmatprep.subr.mxu0 0.0
    %259 = vmatpush1.msra.mxu0 %v214
    %260 = vmatprep.subr.mxu0 0.0
    %261 = vmatpush1.msra.mxu0 %v213
    %262 = vmatprep.subr.mxu0 0.0
    %263 = vmatpush1.msra.mxu0 %v212
    %264 = vmatprep.subr.mxu0 0.0
    %265 = vmatpush1.msra.mxu0 %v211
    %266 = vmatprep.subr.mxu0 0.0
    %267 = vmatpush2.msra.mxu0 0.0
    %268 = vmatprep.subr.mxu0 0.0
    %269 = vmatpush2.msra.mxu0 0.0
    %270 = vmatprep.subr.mxu0 0.0
    %271 = vmatpush2.msra.mxu0 0.0
    %272 = vmatprep.subr.mxu0 0.0
    %273 = vmatpush2.msra.mxu0 0.0
    %274 = vmatprep.subr.mxu0 0.0
    %275 = vmatpush2.msra.mxu0 0.0
    %276 = vmatprep.subr.mxu0 0.0
    %277 = vmatpush2.msra.mxu0 0.0
    %278 = vmatprep.subr.mxu0 0.0
    %279 = vmatpush2.msra.mxu0 0.0
    %280 = vmatprep.subr.mxu0 0.0
    %281 = vmatpush2.msra.mxu0 0.0
    %282 = vmatprep.subr.mxu0 0.0
    %283 = vmatpush2.msra.mxu0 0.0
    %284 = vmatprep.subr.mxu0 0.0
    %285 = vmatpush2.msra.mxu0 0.0
    %286 = vmatprep.subr.mxu0 0.0
    %287 = vmatpush2.msra.mxu0 0.0
    %288 = vmatprep.subr.mxu0 0.0
    %289 = vmatpush2.msra.mxu0 0.0
    %290 = vmatprep.subr.mxu0 0.0
    %291 = vmatpush2.msra.mxu0 0.0
    %292 = vmatprep.subr.mxu0 0.0
    %293 = vmatpush2.msra.mxu0 0.0
    %294 = vmatprep.subr.mxu0 0.0
    %295 = vmatpush2.msra.mxu0 0.0
    %296 = vmatprep.subr.mxu0 0.0
    %297 = vmatpush2.msra.mxu0 0.0
    %298 = vmatprep.mubr.f32.mxu0 0.0
    %299 = vmatmul.mubr.f32.gmra.mxu0 %v210
    %v300 = vpop.f32.mrf.mxu0
    %v301 = vadd.f32 %v232, %v300
    %v302 = vpop.f32.mrf.mxu0
    %303 = vdwg.mxu0
    %v304 = vmul.f32 %v301, 0.2
    %v305 = vmax.f32 %v301, %v304
    %v306 = vld [vmem:[#allocation8] sm:$0xff]
    %v307 = vld [vmem:[#allocation8 + $0x8] sm:$0xff]
    %v308 = vld [vmem:[#allocation8 + $0x10] sm:$0xff]
    %v309 = vld [vmem:[#allocation8 + $0x18] sm:$0xff]
    %v310 = vld [vmem:[#allocation8 + $0x20] sm:$0xff]
    %v311 = vld [vmem:[#allocation8 + $0x28] sm:$0xff]
    %v312 = vld [vmem:[#allocation8 + $0x30] sm:$0xff]
    %v313 = vld [vmem:[#allocation8 + $0x38] sm:$0xff]
    %v314 = vld [vmem:[#allocation8 + $0x40] sm:$0xff]
    %v315 = vld [vmem:[#allocation8 + $0x48] sm:$0xff]
    %v316 = vld [vmem:[#allocation8 + $0x50] sm:$0xff]
    %v317 = vld [vmem:[#allocation8 + $0x58] sm:$0xff]
    %v318 = vld [vmem:[#allocation8 + $0x60] sm:$0xff]
    %v319 = vld [vmem:[#allocation8 + $0x68] sm:$0xff]
    %v320 = vld [vmem:[#allocation8 + $0x70] sm:$0xff]
    %v321 = vld [vmem:[#allocation8 + $0x78] sm:$0xff]
    %v322 = vld [vmem:[%s6] sm:$0x1]
    %v324 = vlaneseq
    %v325 = vshrl.u32 %v324, 7
    %v326 = vsub.s32 0, %v325
    %v327 = vrot.slane %v322, %v326
    %329 = vmatprep.subr.mxu0 0.0
    %330 = vmatpush1.msra.mxu0 %v321
    %331 = vmatprep.subr.mxu0 0.0
    %332 = vmatpush1.msra.mxu0 %v320
    %333 = vmatprep.subr.mxu0 0.0
    %334 = vmatpush1.msra.mxu0 %v319
    %335 = vmatprep.subr.mxu0 0.0
    %336 = vmatpush1.msra.mxu0 %v318
    %337 = vmatprep.subr.mxu0 0.0
    %338 = vmatpush1.msra.mxu0 %v317
    %339 = vmatprep.subr.mxu0 0.0
    %340 = vmatpush1.msra.mxu0 %v316
    %341 = vmatprep.subr.mxu0 0.0
    %342 = vmatpush1.msra.mxu0 %v315
    %343 = vmatprep.subr.mxu0 0.0
    %344 = vmatpush1.msra.mxu0 %v314
    %345 = vmatprep.subr.mxu0 0.0
    %346 = vmatpush1.msra.mxu0 %v313
    %347 = vmatprep.subr.mxu0 0.0
    %348 = vmatpush1.msra.mxu0 %v312
    %349 = vmatprep.subr.mxu0 0.0
    %350 = vmatpush1.msra.mxu0 %v311
    %351 = vmatprep.subr.mxu0 0.0
    %352 = vmatpush1.msra.mxu0 %v310
    %353 = vmatprep.subr.mxu0 0.0
    %354 = vmatpush1.msra.mxu0 %v309
    %355 = vmatprep.subr.mxu0 0.0
    %356 = vmatpush1.msra.mxu0 %v308
    %357 = vmatprep.subr.mxu0 0.0
    %358 = vmatpush1.msra.mxu0 %v307
    %359 = vmatprep.subr.mxu0 0.0
    %360 = vmatpush1.msra.mxu0 %v306
    %361 = vmatprep.subr.mxu0 0.0
    %362 = vmatpush2.msra.mxu0 0.0
    %363 = vmatprep.subr.mxu0 0.0
    %364 = vmatpush2.msra.mxu0 0.0
    %365 = vmatprep.subr.mxu0 0.0
    %366 = vmatpush2.msra.mxu0 0.0
    %367 = vmatprep.subr.mxu0 0.0
    %368 = vmatpush2.msra.mxu0 0.0
    %369 = vmatprep.subr.mxu0 0.0
    %370 = vmatpush2.msra.mxu0 0.0
    %371 = vmatprep.subr.mxu0 0.0
    %372 = vmatpush2.msra.mxu0 0.0
    %373 = vmatprep.subr.mxu0 0.0
    %374 = vmatpush2.msra.mxu0 0.0
    %375 = vmatprep.subr.mxu0 0.0
    %376 = vmatpush2.msra.mxu0 0.0
    %377 = vmatprep.subr.mxu0 0.0
    %378 = vmatpush2.msra.mxu0 0.0
    %379 = vmatprep.subr.mxu0 0.0
    %380 = vmatpush2.msra.mxu0 0.0
    %381 = vmatprep.subr.mxu0 0.0
    %382 = vmatpush2.msra.mxu0 0.0
    %383 = vmatprep.subr.mxu0 0.0
    %384 = vmatpush2.msra.mxu0 0.0
    %385 = vmatprep.subr.mxu0 0.0
    %386 = vmatpush2.msra.mxu0 0.0
    %387 = vmatprep.subr.mxu0 0.0
    %388 = vmatpush2.msra.mxu0 0.0
    %389 = vmatprep.subr.mxu0 0.0
    %390 = vmatpush2.msra.mxu0 0.0
    %391 = vmatprep.subr.mxu0 0.0
    %392 = vmatpush2.msra.mxu0 0.0
    %393 = vmatprep.mubr.f32.mxu0 0.0
    %394 = vmatmul.mubr.f32.gmra.mxu0 %v305
    %v395 = vpop.f32.mrf.mxu0
    %v396 = vadd.f32 %v327, %v395
    %v397 = vpop.f32.mrf.mxu0
    %398 = vdwg.mxu0
    %v399 = vmul.f32 %v396, 0.1
    %v400 = vmax.f32 %v396, %v399
    %v401 = vld [vmem:[#allocation10] sm:$0xff]
    %v402 = vld [vmem:[#allocation10 + $0x8] sm:$0xff]
    %v403 = vld [vmem:[#allocation10 + $0x10] sm:$0xff]
    %v404 = vld [vmem:[#allocation10 + $0x18] sm:$0xff]
    %v405 = vld [vmem:[#allocation10 + $0x20] sm:$0xff]
    %v406 = vld [vmem:[#allocation10 + $0x28] sm:$0xff]
    %v407 = vld [vmem:[#allocation10 + $0x30] sm:$0xff]
    %v408 = vld [vmem:[#allocation10 + $0x38] sm:$0xff]
    %v409 = vld [vmem:[#allocation10 + $0x40] sm:$0xff]
    %v410 = vld [vmem:[#allocation10 + $0x48] sm:$0xff]
    %v411 = vld [vmem:[#allocation10 + $0x50] sm:$0xff]
    %v412 = vld [vmem:[#allocation10 + $0x58] sm:$0xff]
    %v413 = vld [vmem:[#allocation10 + $0x60] sm:$0xff]
    %v414 = vld [vmem:[#allocation10 + $0x68] sm:$0xff]
    %v415 = vld [vmem:[#allocation10 + $0x70] sm:$0xff]
    %v416 = vld [vmem:[#allocation10 + $0x78] sm:$0xff]
    %v417 = vld [vmem:[%s8] sm:$0x1]
    %v419 = vlaneseq
    %v420 = vshrl.u32 %v419, 7
    %v421 = vsub.s32 0, %v420
    %v422 = vrot.slane %v417, %v421
    %424 = vmatprep.subr.mxu0 0.0
    %425 = vmatpush1.msra.mxu0 %v416
    %426 = vmatprep.subr.mxu0 0.0
    %427 = vmatpush1.msra.mxu0 %v415
    %428 = vmatprep.subr.mxu0 0.0
    %429 = vmatpush1.msra.mxu0 %v414
    %430 = vmatprep.subr.mxu0 0.0
    %431 = vmatpush1.msra.mxu0 %v413
    %432 = vmatprep.subr.mxu0 0.0
    %433 = vmatpush1.msra.mxu0 %v412
    %434 = vmatprep.subr.mxu0 0.0
    %435 = vmatpush1.msra.mxu0 %v411
    %436 = vmatprep.subr.mxu0 0.0
    %437 = vmatpush1.msra.mxu0 %v410
    %438 = vmatprep.subr.mxu0 0.0
    %439 = vmatpush1.msra.mxu0 %v409
    %440 = vmatprep.subr.mxu0 0.0
    %441 = vmatpush1.msra.mxu0 %v408
    %442 = vmatprep.subr.mxu0 0.0
    %443 = vmatpush1.msra.mxu0 %v407
    %444 = vmatprep.subr.mxu0 0.0
    %445 = vmatpush1.msra.mxu0 %v406
    %446 = vmatprep.subr.mxu0 0.0
    %447 = vmatpush1.msra.mxu0 %v405
    %448 = vmatprep.subr.mxu0 0.0
    %449 = vmatpush1.msra.mxu0 %v404
    %450 = vmatprep.subr.mxu0 0.0
    %451 = vmatpush1.msra.mxu0 %v403
    %452 = vmatprep.subr.mxu0 0.0
    %453 = vmatpush1.msra.mxu0 %v402
    %454 = vmatprep.subr.mxu0 0.0
    %455 = vmatpush1.msra.mxu0 %v401
    %456 = vmatprep.subr.mxu0 0.0
    %457 = vmatpush2.msra.mxu0 0.0
    %458 = vmatprep.subr.mxu0 0.0
    %459 = vmatpush2.msra.mxu0 0.0
    %460 = vmatprep.subr.mxu0 0.0
    %461 = vmatpush2.msra.mxu0 0.0
    %462 = vmatprep.subr.mxu0 0.0
    %463 = vmatpush2.msra.mxu0 0.0
    %464 = vmatprep.subr.mxu0 0.0
    %465 = vmatpush2.msra.mxu0 0.0
    %466 = vmatprep.subr.mxu0 0.0
    %467 = vmatpush2.msra.mxu0 0.0
    %468 = vmatprep.subr.mxu0 0.0
    %469 = vmatpush2.msra.mxu0 0.0
    %470 = vmatprep.subr.mxu0 0.0
    %471 = vmatpush2.msra.mxu0 0.0
    %472 = vmatprep.subr.mxu0 0.0
    %473 = vmatpush2.msra.mxu0 0.0
    %474 = vmatprep.subr.mxu0 0.0
    %475 = vmatpush2.msra.mxu0 0.0
    %476 = vmatprep.subr.mxu0 0.0
    %477 = vmatpush2.msra.mxu0 0.0
    %478 = vmatprep.subr.mxu0 0.0
    %479 = vmatpush2.msra.mxu0 0.0
    %480 = vmatprep.subr.mxu0 0.0
    %481 = vmatpush2.msra.mxu0 0.0
    %482 = vmatprep.subr.mxu0 0.0
    %483 = vmatpush2.msra.mxu0 0.0
    %484 = vmatprep.subr.mxu0 0.0
    %485 = vmatpush2.msra.mxu0 0.0
    %486 = vmatprep.subr.mxu0 0.0
    %487 = vmatpush2.msra.mxu0 0.0
    %488 = vmatprep.mubr.f32.mxu0 0.0
    %489 = vmatmul.mubr.f32.gmra.mxu0 %v400
    %v490 = vpop.f32.mrf.mxu0
    %v491 = vadd.f32 %v422, %v490
    %v492 = vpop.f32.mrf.mxu0
    %493 = vdwg.mxu0
    %v494 = vmul.f32 %v491, 0.2
    %v495 = vmax.f32 %v491, %v494
    %v496 = vld [vmem:[#allocation11] sm:$0xff]
    %v497 = vld [vmem:[#allocation11 + $0x8] sm:$0xff]
    %v498 = vld [vmem:[#allocation11 + $0x10] sm:$0xff]
    %v499 = vld [vmem:[#allocation11 + $0x18] sm:$0xff]
    %v500 = vld [vmem:[#allocation11 + $0x20] sm:$0xff]
    %v501 = vld [vmem:[#allocation11 + $0x28] sm:$0xff]
    %v502 = vld [vmem:[#allocation11 + $0x30] sm:$0xff]
    %v503 = vld [vmem:[#allocation11 + $0x38] sm:$0xff]
    %v504 = vld [vmem:[#allocation11 + $0x40] sm:$0xff]
    %v505 = vld [vmem:[#allocation11 + $0x48] sm:$0xff]
    %v506 = vld [vmem:[#allocation11 + $0x50] sm:$0xff]
    %v507 = vld [vmem:[#allocation11 + $0x58] sm:$0xff]
    %v508 = vld [vmem:[#allocation11 + $0x60] sm:$0xff]
    %v509 = vld [vmem:[#allocation11 + $0x68] sm:$0xff]
    %v510 = vld [vmem:[#allocation11 + $0x70] sm:$0xff]
    %v511 = vld [vmem:[#allocation11 + $0x78] sm:$0xff]
    %v512 = vld [vmem:[%s10] sm:$0x1]
    %v514 = vlaneseq
    %v515 = vshrl.u32 %v514, 7
    %v516 = vsub.s32 0, %v515
    %v517 = vrot.slane %v512, %v516
    %519 = vmatprep.subr.mxu0 0.0
    %520 = vmatpush1.msra.mxu0 %v511
    %521 = vmatprep.subr.mxu0 0.0
    %522 = vmatpush1.msra.mxu0 %v510
    %523 = vmatprep.subr.mxu0 0.0
    %524 = vmatpush1.msra.mxu0 %v509
    %525 = vmatprep.subr.mxu0 0.0
    %526 = vmatpush1.msra.mxu0 %v508
    %527 = vmatprep.subr.mxu0 0.0
    %528 = vmatpush1.msra.mxu0 %v507
    %529 = vmatprep.subr.mxu0 0.0
    %530 = vmatpush1.msra.mxu0 %v506
    %531 = vmatprep.subr.mxu0 0.0
    %532 = vmatpush1.msra.mxu0 %v505
    %533 = vmatprep.subr.mxu0 0.0
    %534 = vmatpush1.msra.mxu0 %v504
    %535 = vmatprep.subr.mxu0 0.0
    %536 = vmatpush1.msra.mxu0 %v503
    %537 = vmatprep.subr.mxu0 0.0
    %538 = vmatpush1.msra.mxu0 %v502
    %539 = vmatprep.subr.mxu0 0.0
    %540 = vmatpush1.msra.mxu0 %v501
    %541 = vmatprep.subr.mxu0 0.0
    %542 = vmatpush1.msra.mxu0 %v500
    %543 = vmatprep.subr.mxu0 0.0
    %544 = vmatpush1.msra.mxu0 %v499
    %545 = vmatprep.subr.mxu0 0.0
    %546 = vmatpush1.msra.mxu0 %v498
    %547 = vmatprep.subr.mxu0 0.0
    %548 = vmatpush1.msra.mxu0 %v497
    %549 = vmatprep.subr.mxu0 0.0
    %550 = vmatpush1.msra.mxu0 %v496
    %551 = vmatprep.subr.mxu0 0.0
    %552 = vmatpush2.msra.mxu0 0.0
    %553 = vmatprep.subr.mxu0 0.0
    %554 = vmatpush2.msra.mxu0 0.0
    %555 = vmatprep.subr.mxu0 0.0
    %556 = vmatpush2.msra.mxu0 0.0
    %557 = vmatprep.subr.mxu0 0.0
    %558 = vmatpush2.msra.mxu0 0.0
    %559 = vmatprep.subr.mxu0 0.0
    %560 = vmatpush2.msra.mxu0 0.0
    %561 = vmatprep.subr.mxu0 0.0
    %562 = vmatpush2.msra.mxu0 0.0
    %563 = vmatprep.subr.mxu0 0.0
    %564 = vmatpush2.msra.mxu0 0.0
    %565 = vmatprep.subr.mxu0 0.0
    %566 = vmatpush2.msra.mxu0 0.0
    %567 = vmatprep.subr.mxu0 0.0
    %568 = vmatpush2.msra.mxu0 0.0
    %569 = vmatprep.subr.mxu0 0.0
    %570 = vmatpush2.msra.mxu0 0.0
    %571 = vmatprep.subr.mxu0 0.0
    %572 = vmatpush2.msra.mxu0 0.0
    %573 = vmatprep.subr.mxu0 0.0
    %574 = vmatpush2.msra.mxu0 0.0
    %575 = vmatprep.subr.mxu0 0.0
    %576 = vmatpush2.msra.mxu0 0.0
    %577 = vmatprep.subr.mxu0 0.0
    %578 = vmatpush2.msra.mxu0 0.0
    %579 = vmatprep.subr.mxu0 0.0
    %580 = vmatpush2.msra.mxu0 0.0
    %581 = vmatprep.subr.mxu0 0.0
    %582 = vmatpush2.msra.mxu0 0.0
    %583 = vmatprep.mubr.f32.mxu0 0.0
    %584 = vmatmul.mubr.f32.gmra.mxu0 %v495
    %v585 = vpop.f32.mrf.mxu0
    %v586 = vadd.f32 %v517, %v585
    %v587 = vpop.f32.mrf.mxu0
    %588 = vdwg.mxu0
    %589 = vst [vmem:[#allocation13] sm:$0xff] %v586
    // Predicated region
    $region70: #{tpu_custom_call.1} parent=1 // pred_check
      _
    $region71: #{tpu_custom_call.1} parent=1 // pred_check_branch
      %591 = sbr.rel (0) target = $region73
    $region72: #{tpu_custom_call.1} parent=1 // pred_region
      %s593 = ssub.s32 128, 128
      %594 = vsyncadd [#allocation4], %s593
      %s596 = sshll.u32 [#allocation13], 4
      %s597 = int_to_ptr.vmem [resolvable:$true] %s596
      %599 = dma.vmem_to_hbm [thread:$0]  %s597, 128, %s11, [#allocation4]
    $region73: #{tpu_custom_call.1} parent=1 // pred_fallthru
      _
    // Predicated region
    $region74: #{tpu_custom_call.1} parent=1 // pred_check
      _
    $region75: #{tpu_custom_call.1} parent=1 // pred_check_branch
      %601 = sbr.rel (0) target = $region77
    $region76: #{tpu_custom_call.1} parent=1 // pred_region
      %602 = dma.done [#allocation4], 128
    $region77: #{tpu_custom_call.1} parent=1 // pred_fallthru
      _
    %603 = vsyncpa [#allocation3], 1
    %604 = vsyncpa [#allocation6], 1
    %605 = vsyncpa [#allocation9], 1
    %606 = vsyncpa [#allocation12], 1
    %607 = vsyncpa [#allocation4], 1

</llo_original>
